<compile_context>
chip_gen: v6e
topology: v6e:2x2x1
jax: 0.10.0
libtpu: 0.0.40
codegen_flags: <defaults>
</compile_context>

<pallas_src>
from functools import partial

import jax
import jax.numpy as jnp
from jax.experimental import pallas as pl
from jax.experimental.pallas import tpu as pltpu


def _vmem_limit_bytes():
    """Generation-aware VMEM budget: ~75% of physical per-core VMEM, capped.

    v7x (64 MiB/TC) -> ~48 MiB (leaves headroom for compiler scratch/semaphores);
    v5e/v6e (128 MiB) -> 96 MiB.
    """
    try:
        cap = pltpu.get_tpu_info().vmem_capacity_bytes
    except Exception:  # noqa: BLE001 - info query unavailable -> conservative default
        cap = 128 * 1024 * 1024
    return min(int(cap) * 3 // 4, 100 * 1024 * 1024)


# ----------------------------------------------------------------------------- #
# Kernel 1: fused QKV projection (lane-dense, computed once per token).
# ----------------------------------------------------------------------------- #
def _qkv_proj_kernel(x_ref, w_ref, qkv_ref):
    """One (batch, token-tile) grid step.

    x_ref:   (1, tp, C)   input rows (compute dtype)
    w_ref:   (C, 3C)      fused QKV weight, scale folded into Q columns (resident)
    qkv_ref: (1, tp, 3C)  lane-dense output (compute dtype)
    """
    # MXU accumulates f32 internally; pop results directly in the compute dtype to
    # halve MXU-result / vreg traffic (per review).
    qkv_ref[0] = jnp.dot(x_ref[0], w_ref[...],
                         preferred_element_type=qkv_ref.dtype)


# ----------------------------------------------------------------------------- #
# Kernel 2: flash attention (online softmax) + fused output projection.
# ----------------------------------------------------------------------------- #
def _flash_attn_kernel(q_ref, k_ref, v_ref, wp_ref, bp_ref, o_ref,
                       m_sc, l_sc, acc_sc, *, compute_dtype):
    """One (batch, q-tile, kv-tile) grid step.

    Blocks:
      q_ref:  (1, H, tq, Dh)   pre-projected, pre-scaled Q tile
      k_ref:  (1, H, tk, Dh)   pre-projected K tile
      v_ref:  (1, H, tk, Dh)   pre-projected V tile
      wp_ref: (H, Dh, C)       head-major output-projection weight (resident)
      bp_ref: (1, C)           output-projection bias (f32, resident)
      o_ref:  (1, tq, C)       output rows
    Scratch (persists across the kv axis):
      m_sc:   (H, tq, 1)   f32  running row max
      l_sc:   (H, tq, 1)   f32  running softmax denominator
      acc_sc: (H, tq, Dh)  f32  running output accumulator
    """
    ki = pl.program_id(2)
    nk = pl.num_programs(2)
    cdt = compute_dtype

    @pl.when(ki == 0)
    def _init():
        m_sc[...] = jnp.full(m_sc.shape, -jnp.inf, dtype=jnp.float32)
        l_sc[...] = jnp.zeros(l_sc.shape, dtype=jnp.float32)
        acc_sc[...] = jnp.zeros(acc_sc.shape, dtype=jnp.float32)

    q = q_ref[0]                                    # (H, tq, Dh)
    k = k_ref[0]                                    # (H, tk, Dh)
    v = v_ref[0]                                    # (H, tk, Dh)

    # Scores (scale already folded into the Q projection weight).
    s = jnp.einsum('hqd,hkd->hqk', q, k,
                   preferred_element_type=jnp.float32)           # (H, tq, tk)

    # Online softmax update (statistics in f32).
    m_prev = m_sc[...]
    m_new = jnp.maximum(m_prev, s.max(axis=-1, keepdims=True))
    alpha = jnp.exp(m_prev - m_new)
    p = jnp.exp(s - m_new)
    l_sc[...] = alpha * l_sc[...] + p.sum(axis=-1, keepdims=True)
    acc_sc[...] = alpha * acc_sc[...] + jnp.einsum(
        'hqk,hkd->hqd', p.astype(cdt), v, preferred_element_type=jnp.float32)
    m_sc[...] = m_new

    @pl.when(ki == nk - 1)
    def _finalize():
        # One reciprocal per (head, query row); EUP approx on the fast (bf16) path,
        # exact on the f32 correctness path (v5e has no bf16 EUP anyway).
        approx = jnp.dtype(cdt) != jnp.dtype(jnp.float32)
        inv_l = pl.reciprocal(l_sc[...], approx=approx)          # (H, tq, 1)
        out_h = (acc_sc[...] * inv_l).astype(cdt)                # (H, tq, Dh)
        # Output projection: per-head (tq, Dh) @ (Dh, C) -> lane-dense C output,
        # summed over heads (== concat-heads + (C, C) matmul), plus bias.
        ctx = jnp.einsum('hqd,hdc->hqc', out_h, wp_ref[...],
                         preferred_element_type=jnp.float32)     # (H, tq, C)
        y = ctx.sum(axis=0) + bp_ref[0].astype(jnp.float32)      # (tq, C)
        o_ref[0] = y.astype(o_ref.dtype)


# ----------------------------------------------------------------------------- #
# Wrapper.
# ----------------------------------------------------------------------------- #
def memory_efficient_attention(x, qkv_w, proj_w, proj_b, num_heads,
                               *, block_q=128, block_k=128, block_p=None,
                               compute_dtype=jnp.bfloat16,
                               single_buffer_weights=True):
    """Forward pass of MemoryEfficientAttention.

    x:      (B, N, C)
    qkv_w:  (3C, C)   fused qkv Linear weight (PyTorch layout, qkv_bias=False)
    proj_w: (C, C)    output-projection Linear weight
    proj_b: (C,)      output-projection bias
    """
    B, N, C = x.shape
    H = num_heads
    assert C % H == 0
    Dh = C // H
    scale = Dh ** -0.5
    cdt = compute_dtype
    out_dtype = x.dtype

    block_q = min(block_q, N)
    block_k = min(block_k, N)
    block_p = block_q if block_p is None else min(block_p, N)
    assert N % block_q == 0 and N % block_k == 0 and N % block_p == 0

    # Stream x in the compute dtype (halves the HBM read on the bf16 fast path).
    x_c = x.astype(cdt)

    # PyTorch Linear computes x @ W.T. Build the fused (C, 3C) weight with the
    # softmax scale folded into the Q columns. Column order along 3C is
    # (3, H, Dh)-flattened (matches the PyTorch reshape in forward()).
    w_qkv = qkv_w.T.reshape(C, 3, H, Dh)
    w_qkv = w_qkv.at[:, 0].multiply(scale)
    w_qkv = w_qkv.reshape(C, 3 * C).astype(cdt)
    # Head-major output projection weight and f32 bias.
    w_p = proj_w.T.reshape(H, Dh, C).astype(cdt)
    b_p = proj_b.reshape(1, C).astype(jnp.float32)

    vmem_bytes = _vmem_limit_bytes()

    def run(single_buffer):
        def w_spec(shape, idx_map):
            # Resident weights: constant index_map => single-buffering saves VMEM
            # (matters for large C on v7x's 64 MiB) and costs nothing.
            if single_buffer:
                return pl.BlockSpec(shape, idx_map, pipeline_mode=pl.Buffered(1))
            return pl.BlockSpec(shape, idx_map)

        # --- 1) fused QKV projection (lane-dense, once per token) ------------- #
        qkv = pl.pallas_call(
            _qkv_proj_kernel,
            out_shape=jax.ShapeDtypeStruct((B, N, 3 * C), cdt),
            grid_spec=pltpu.PrefetchScalarGridSpec(
                num_scalar_prefetch=0,
                grid=(B, N // block_p),
                in_specs=[
                    pl.BlockSpec((1, block_p, C), lambda b, i: (b, i, 0)),
                    w_spec((C, 3 * C), lambda b, i: (0, 0)),
                ],
                out_specs=pl.BlockSpec((1, block_p, 3 * C), lambda b, i: (b, i, 0)),
            ),
            compiler_params=pltpu.CompilerParams(
                dimension_semantics=("parallel", "parallel"),
                vmem_limit_bytes=vmem_bytes,
            ),
        )(x_c, w_qkv)

        # --- 2) one head-major relayout in XLA (cheap, done once) ------------- #
        qkv_h = qkv.reshape(B, N, 3, H, Dh).transpose(2, 0, 3, 1, 4)  # (3,B,H,N,Dh)
        q, k, v = qkv_h[0], qkv_h[1], qkv_h[2]                         # (B,H,N,Dh)

        # --- 3) flash attention + fused output projection --------------------- #
        kernel = partial(_flash_attn_kernel, compute_dtype=cdt)
        return pl.pallas_call(
            kernel,
            out_shape=jax.ShapeDtypeStruct((B, N, C), out_dtype),
            grid_spec=pltpu.PrefetchScalarGridSpec(
                num_scalar_prefetch=0,
                grid=(B, N // block_q, N // block_k),
                in_specs=[
                    pl.BlockSpec((1, H, block_q, Dh), lambda b, qi, ki: (b, 0, qi, 0)),
                    pl.BlockSpec((1, H, block_k, Dh), lambda b, qi, ki: (b, 0, ki, 0)),
                    pl.BlockSpec((1, H, block_k, Dh), lambda b, qi, ki: (b, 0, ki, 0)),
                    w_spec((H, Dh, C), lambda b, qi, ki: (0, 0, 0)),
                    w_spec((1, C), lambda b, qi, ki: (0, 0)),
                ],
                out_specs=pl.BlockSpec((1, block_q, C), lambda b, qi, ki: (b, qi, 0)),
                scratch_shapes=[
                    pltpu.VMEM((H, block_q, 1), jnp.float32),    # running max m
                    pltpu.VMEM((H, block_q, 1), jnp.float32),    # running denom l
                    pltpu.VMEM((H, block_q, Dh), jnp.float32),   # output accumulator
                ],
            ),
            compiler_params=pltpu.CompilerParams(
                # batch & q-tile axes are independent -> "parallel"; kv axis carries
                # the online-softmax accumulation -> "arbitrary".
                dimension_semantics=("parallel", "parallel", "arbitrary"),
                vmem_limit_bytes=vmem_bytes,
            ),
        )(q, k, v, w_p, b_p)

    if single_buffer_weights:
        try:
            return jax.block_until_ready(run(True))
        except Exception:  # noqa: BLE001
            # This jax/libtpu build rejects pipeline_mode=pl.Buffered(1);
            # fall back to default double-buffered resident weights.
            pass
    return run(False)


def _reference(x, qkv_w, proj_w, proj_b, num_heads):
    """Pure-JAX replica of the PyTorch forward pass for verification."""
    B, N, C = x.shape
    Dh = C // num_heads
    scale = Dh ** -0.5
    qkv = x @ qkv_w.T                                            # (B, N, 3C)
    qkv = qkv.reshape(B, N, 3, num_heads, Dh).transpose(2, 0, 3, 1, 4)
    q, k, v = qkv[0], qkv[1], qkv[2]                             # (B, H, N, Dh)
    attn = jnp.einsum('bhnd,bhmd->bhnm', q, k) * scale
    attn = jax.nn.softmax(attn, axis=-1)
    out = jnp.einsum('bhnm,bhmd->bhnd', attn, v)                 # (B, H, N, Dh)
    out = out.transpose(0, 2, 1, 3).reshape(B, N, C)
    return out @ proj_w.T + proj_b


if __name__ == "__main__":
    # Small but multi-tile: N=256 with 128-blocks exercises the online softmax
    # across 2 kv tiles and 2 q tiles per batch element, plus the separate
    # projection kernel. (C=64 / Dh=8 is deliberately tiny; do not tune on it.)
    B, N, C, H = 2, 256, 64, 8

    key = jax.random.PRNGKey(0)
    k1, k2, k3, k4 = jax.random.split(key, 4)
    x = jax.random.normal(k1, (B, N, C), dtype=jnp.float32)
    qkv_w = 0.1 * jax.random.normal(k2, (3 * C, C), dtype=jnp.float32)
    proj_w = 0.1 * jax.random.normal(k3, (C, C), dtype=jnp.float32)
    proj_b = 0.1 * jax.random.normal(k4, (C,), dtype=jnp.float32)

    ref = _reference(x, qkv_w, proj_w, proj_b, H)

    # f32 path: tight check of the flash / online-softmax / head-layout math.
    out_f32 = memory_efficient_attention(x, qkv_w, proj_w, proj_b, H,
                                         compute_dtype=jnp.float32)
    out_f32 = jax.block_until_ready(out_f32)
    assert out_f32.shape == (B, N, C)
    assert jnp.allclose(out_f32, ref, atol=1e-3, rtol=1e-3), "f32 path mismatch"

    # Default fast path: bf16 MXU inputs / streams, f32 statistics & accumulation.
    out_bf16 = memory_efficient_attention(x, qkv_w, proj_w, proj_b, H)
    out_bf16 = jax.block_until_ready(out_bf16)
    assert out_bf16.shape == (B, N, C)
    assert jnp.allclose(out_bf16, ref, atol=5e-2, rtol=5e-2), "bf16 path mismatch"

    print("KERNEL_OK")
</pallas_src>

<mosaic_0001>
module attributes {stable_mosaic.version = 11 : i64} {
  func.func @_qkv_proj_kernel(%arg0: i32, %arg1: i32, %arg2: memref<1x128x64xf32, #tpu.memory_space<vmem>>, %arg3: memref<64x192xf32, #tpu.memory_space<vmem>>, %arg4: memref<1x128x192xf32, #tpu.memory_space<vmem>>) attributes {dimension_semantics = [#tpu.dimension_semantics<parallel>, #tpu.dimension_semantics<parallel>], iteration_bounds = array<i64: 2, 2>, scalar_prefetch = 0 : i64, scratch_operands = 0 : i64, tpu.core_type = #tpu.core_type<tc>, window_params = [{transform_indices = @transform_0, window_bounds = array<i64: 1, 128, 64>}, {pipeline_mode = #tpu.pipeline_mode<synchronous>, transform_indices = @transform_1, window_bounds = array<i64: 64, 192>}, {transform_indices = @transform_2, window_bounds = array<i64: 1, 128, 192>}]} {
    %c0 = arith.constant 0 : index
    %c0_0 = arith.constant 0 : index
    %c0_1 = arith.constant 0 : index
    %0 = vector.load %arg2[%c0, %c0_0, %c0_1] : memref<1x128x64xf32, #tpu.memory_space<vmem>>, vector<1x128x64xf32>
    %1 = vector.shape_cast %0 : vector<1x128x64xf32> to vector<128x64xf32>
    %c0_2 = arith.constant 0 : index
    %c0_3 = arith.constant 0 : index
    %2 = vector.load %arg3[%c0_2, %c0_3] : memref<64x192xf32, #tpu.memory_space<vmem>>, vector<64x192xf32>
    %cst = arith.constant dense<0.000000e+00> : vector<128x192xf32>
    %3 = tpu.matmul %1, %2, %cst {dimension_numbers = #tpu.dot_dimension_numbers<[1], [0], [0], [1], [0, 0, 1, 1], [], []>} : vector<128x64xf32>, vector<64x192xf32>, vector<128x192xf32> -> vector<128x192xf32>
    %c0_4 = arith.constant 0 : index
    %c0_5 = arith.constant 0 : index
    %c0_6 = arith.constant 0 : index
    %4 = vector.load %arg4[%c0_4, %c0_5, %c0_6] : memref<1x128x192xf32, #tpu.memory_space<vmem>>, vector<1x128x192xf32>
    %5 = vector.shape_cast %4 : vector<1x128x192xf32> to vector<128x192xf32>
    %6 = vector.shape_cast %3 : vector<128x192xf32> to vector<1x128x192xf32>
    tpu.vector_store %arg4[%c0_4, %c0_5, %c0_6], %6 {strides = array<i32>} : memref<1x128x192xf32, #tpu.memory_space<vmem>>, vector<1x128x192xf32>,
    return
  }
  func.func @transform_0(%arg0: i32, %arg1: i32) -> (i32, i32, i32) {
    %c0_i32 = arith.constant 0 : i32
    %c0_i32_0 = arith.constant 0 : i32
    return %arg0, %arg1, %c0_i32 : i32, i32, i32
  }
  func.func @transform_1(%arg0: i32, %arg1: i32) -> (i32, i32) {
    %c0_i32 = arith.constant 0 : i32
    %c0_i32_0 = arith.constant 0 : i32
    %c0_i32_1 = arith.constant 0 : i32
    return %c0_i32, %c0_i32_0 : i32, i32
  }
  func.func @transform_2(%arg0: i32, %arg1: i32) -> (i32, i32, i32) {
    %c0_i32 = arith.constant 0 : i32
    %c0_i32_0 = arith.constant 0 : i32
    return %arg0, %arg1, %c0_i32 : i32, i32, i32
  }
}

module attributes {stable_mosaic.version = 11 : i64} {
  func.func @_qkv_proj_kernel(%arg0: i32, %arg1: i32, %arg2: memref<1x128x64xf32, #tpu.memory_space<vmem>>, %arg3: memref<64x192xf32, #tpu.memory_space<vmem>>, %arg4: memref<1x128x192xf32, #tpu.memory_space<vmem>>) attributes {dimension_semantics = [#tpu.dimension_semantics<parallel>, #tpu.dimension_semantics<parallel>], iteration_bounds = array<i64: 2, 2>, scalar_prefetch = 0 : i64, scratch_operands = 0 : i64, tpu.core_type = #tpu.core_type<tc>, window_params = [{transform_indices = @transform_0, window_bounds = array<i64: 1, 128, 64>}, {pipeline_mode = #tpu.pipeline_mode<synchronous>, transform_indices = @transform_1, window_bounds = array<i64: 64, 192>}, {transform_indices = @transform_2, window_bounds = array<i64: 1, 128, 192>}]} {
    %c0 = arith.constant 0 : index
    %c0_0 = arith.constant 0 : index
    %c0_1 = arith.constant 0 : index
    %0 = vector.load %arg2[%c0, %c0_0, %c0_1] : memref<1x128x64xf32, #tpu.memory_space<vmem>>, vector<1x128x64xf32>
    %1 = vector.shape_cast %0 : vector<1x128x64xf32> to vector<128x64xf32>
    %c0_2 = arith.constant 0 : index
    %c0_3 = arith.constant 0 : index
    %2 = vector.load %arg3[%c0_2, %c0_3] : memref<64x192xf32, #tpu.memory_space<vmem>>, vector<64x192xf32>
    %cst = arith.constant dense<0.000000e+00> : vector<128x192xf32>
    %3 = tpu.matmul %1, %2, %cst {dimension_numbers = #tpu.dot_dimension_numbers<[1], [0], [0], [1], [0, 0, 1, 1], [], []>} : vector<128x64xf32>, vector<64x192xf32>, vector<128x192xf32> -> vector<128x192xf32>
    %c0_4 = arith.constant 0 : index
    %c0_5 = arith.constant 0 : index
    %c0_6 = arith.constant 0 : index
    %4 = vector.load %arg4[%c0_4, %c0_5, %c0_6] : memref<1x128x192xf32, #tpu.memory_space<vmem>>, vector<1x128x192xf32>
    %5 = vector.shape_cast %4 : vector<1x128x192xf32> to vector<128x192xf32>
    %6 = vector.shape_cast %3 : vector<128x192xf32> to vector<1x128x192xf32>
    tpu.vector_store %arg4[%c0_4, %c0_5, %c0_6], %6 {strides = array<i32>} : memref<1x128x192xf32, #tpu.memory_space<vmem>>, vector<1x128x192xf32>,
    return
  }
  func.func @transform_0(%arg0: i32, %arg1: i32) -> (i32, i32, i32) {
    %c0_i32 = arith.constant 0 : i32
    %c0_i32_0 = arith.constant 0 : i32
    return %arg0, %arg1, %c0_i32 : i32, i32, i32
  }
  func.func @transform_1(%arg0: i32, %arg1: i32) -> (i32, i32) {
    %c0_i32 = arith.constant 0 : i32
    %c0_i32_0 = arith.constant 0 : i32
    %c0_i32_1 = arith.constant 0 : i32
    return %c0_i32, %c0_i32_0 : i32, i32
  }
  func.func @transform_2(%arg0: i32, %arg1: i32) -> (i32, i32, i32) {
    %c0_i32 = arith.constant 0 : i32
    %c0_i32_0 = arith.constant 0 : i32
    return %arg0, %arg1, %c0_i32 : i32, i32, i32
  }
}

</mosaic_0001>

<llo_original>
// kernel: tpu_custom_call.1
$region0: #{tpu_custom_call.1}
  #allocation0 [shape = 'u32[]', space=smem, size = 0x4, offset = 0x4, fixed_abs, tag = 'smem constant byte address 0x4 - core index']
  #allocation1 [shape = 'u32[144,128]{1,0:T(1,128)}', space=vmem, size = 0x12000, scoped, tag = 'internal scratch']
  %s0 = inlined_call_operand.vmem [shape: f32[2,256,64], index: 0, kind: input, shape index: {}]
  %s1 = inlined_call_operand.vmem [shape: f32[64,192], index: 1, kind: input, shape index: {}]
  %s2 = inlined_call_operand.vmem [shape: f32[2,256,192], index: 2, kind: output, shape index: {}]
  %s3 = sld [smem:[#allocation0]]
  $region41: #{tpu_custom_call.1} parent=0
    _
  %s5 = ssub.s32 1, %s3
  %s6 = scalar_select 0, %s5, %s3
  loop: start=0, step=1, limit=6
  $region2: #{tpu_custom_call.1} parent=0 // loop_pre_header
    _
  $region3: #{tpu_custom_call.1} parent=0 // loop_header
    %s8 = sphi 0, %s12
    %p9 = scmp.ge.s32.totalorder %s8, 6
    %s15 = sphi 0, %s27
    %s16 = sphi 0, %s23
    %s17 = sphi 0, %s15
    %s18 = sphi 0, %s16
    %s19 = sphi 0, %s17
    %s20 = sphi 0, %s18
    %s32 = sphi 0, %s34
    %s35 = sphi 0, %s32
    %s36 = sphi 0, %s35
    %s52 = sphi 0, %s36
    %s56 = sphi 0, %s56
    %s58 = sphi 0, %s56
    %s59 = sphi 0, %s58
    %s73 = sphi 0, %s59
    %s81 = sphi 0, %s83
    %s84 = sphi 0, %s81
    %s85 = sphi 0, %s84
    %s101 = sphi 0, %s85
  $region4: #{tpu_custom_call.1} parent=0 // loop_header_branch
    %11 = sbr.rel (%p9) target = $region8
  $region5: #{tpu_custom_call.1} parent=0 // loop_body
    %s13 = ssub.s32 %s8, 1
    %s14 = ssub.s32 %s8, 2
    %s21 = sadd.s32 1, %s16
    %p22 = scmp.ge.s32.totalorder %s21, 2
    %s23 = scalar_select %p22, 0, %s21
    %s24 = sadd.s32 1, %s15
    %s25 = scalar_select %p22, %s24, %s15
    %p26 = scmp.ge.s32.totalorder %s25, 2
    %s27 = scalar_select %p26, 0, %s25
    %s28 = ssub.s32 %s15, %s27
    %s29 = ssub.s32 %s16, %s23
    %s30 = sor.u32 %s28, %s29
    %p31 = scmp.eq.s32.totalorder %s30, 0
    %s33 = sadd.s32 %s32, 1
    %s34 = scalar_select %p31, %s32, %s33
    %p37 = pneg %p31
    %p38 = scmp.eq.s32.totalorder %s8, 3
    %p39 = por %p37, %p38
    %p40 = scmp.ne.s32.totalorder %s32, %s35
    %p41 = scmp.eq.s32.totalorder %s8, 0
    %p42 = por %p40, %p41
    %p43 = scmp.ne.s32.totalorder %s32, %s35
    %p44 = scmp.eq.s32.totalorder %s13, 3
    %p45 = por %p43, %p44
    %p46 = scmp.ne.s32.totalorder %s35, %s36
    %p47 = scmp.eq.s32.totalorder %s13, 0
    %p48 = por %p46, %p47
    %p49 = scmp.ne.s32.totalorder %s35, %s36
    %p50 = scmp.eq.s32.totalorder %s14, 3
    %p51 = por %p49, %p50
    %p53 = scmp.ne.s32.totalorder %s36, %s52
    %p54 = scmp.eq.s32.totalorder %s14, 0
    %p55 = por %p53, %p54
    %s57 = sadd.s32 %s56, 1
    %p60 = scmp.eq.s32.totalorder %s8, 3
    %p61 = scmp.ne.s32.totalorder %s56, %s58
    %p62 = scmp.eq.s32.totalorder %s8, 0
    %p63 = por %p61, %p62
    %p64 = scmp.ne.s32.totalorder %s56, %s58
    %p65 = scmp.eq.s32.totalorder %s13, 3
    %p66 = por %p64, %p65
    %p67 = scmp.ne.s32.totalorder %s58, %s59
    %p68 = scmp.eq.s32.totalorder %s13, 0
    %p69 = por %p67, %p68
    %p70 = scmp.ne.s32.totalorder %s58, %s59
    %p71 = scmp.eq.s32.totalorder %s14, 3
    %p72 = por %p70, %p71
    %p74 = scmp.ne.s32.totalorder %s59, %s73
    %p75 = scmp.eq.s32.totalorder %s14, 0
    %p76 = por %p74, %p75
    %s77 = ssub.s32 %s15, %s27
    %s78 = ssub.s32 %s16, %s23
    %s79 = sor.u32 %s77, %s78
    %p80 = scmp.eq.s32.totalorder %s79, 0
    %s82 = sadd.s32 %s81, 1
    %s83 = scalar_select %p80, %s81, %s82
    %p86 = pneg %p80
    %p87 = scmp.eq.s32.totalorder %s8, 3
    %p88 = por %p86, %p87
    %p89 = scmp.ne.s32.totalorder %s81, %s84
    %p90 = scmp.eq.s32.totalorder %s8, 0
    %p91 = por %p89, %p90
    %p92 = scmp.ne.s32.totalorder %s81, %s84
    %p93 = scmp.eq.s32.totalorder %s13, 3
    %p94 = por %p92, %p93
    %p95 = scmp.ne.s32.totalorder %s84, %s85
    %p96 = scmp.eq.s32.totalorder %s13, 0
    %p97 = por %p95, %p96
    %p98 = scmp.ne.s32.totalorder %s84, %s85
    %p99 = scmp.eq.s32.totalorder %s14, 3
    %p100 = por %p98, %p99
    %p102 = scmp.ne.s32.totalorder %s85, %s101
    %p103 = scmp.eq.s32.totalorder %s14, 0
    %p104 = por %p102, %p103
    %p105 = scmp.le.s32.totalorder 1, %s8
    %p106 = scmp.lt.s32.totalorder %s8, 5
    %p107 = pnand %p105, %p106
    %p108 = pneg %p107
    // Predicated region
    $region9: #{tpu_custom_call.1} parent=5 // pred_check
      _
    $region10: #{tpu_custom_call.1} parent=5 // pred_check_branch
      %110 = sbr.rel (%p107) target = $region12
    $region11: #{tpu_custom_call.1} parent=5 // pred_region
      %s111 = ssub.s32 %s8, 1
      // Predicated region
      $region13: #{tpu_custom_call.1} parent=11 // pred_check
        %p112 = pneg %p69
      $region14: #{tpu_custom_call.1} parent=11 // pred_check_branch
        %114 = sbr.rel (%p112) target = $region16
      $region15: #{tpu_custom_call.1} parent=11 // pred_region
        _
      $region16: #{tpu_custom_call.1} parent=11 // pred_fallthru
        _
    $region12: #{tpu_custom_call.1} parent=5 // pred_fallthru
      _
    %p115 = scmp.lt.s32.totalorder %s8, 4
    // Predicated region
    $region17: #{tpu_custom_call.1} parent=5 // pred_check
      %p116 = pneg %p115
    $region18: #{tpu_custom_call.1} parent=5 // pred_check_branch
      %118 = sbr.rel (%p116) target = $region20
    $region19: #{tpu_custom_call.1} parent=5 // pred_region
      // Predicated region
      $region21: #{tpu_custom_call.1} parent=19 // pred_check
        %p119 = pneg %p42
      $region22: #{tpu_custom_call.1} parent=19 // pred_check_branch
        %121 = sbr.rel (%p119) target = $region24
      $region23: #{tpu_custom_call.1} parent=19 // pred_region
        %s122 = smul.u32 16, %s16
        %p123 = scmp.lt.s32.totalorder %s15, 1
        %s124 = scalar_select %p123, %s15, 1
        %p125 = scmp.lt.s32.totalorder %s122, 31
        %s126 = scalar_select %p125, %s122, 31
        %s127 = smul.addr %s124, 32
        %s128 = sadd.s32 %s126, %s127
        %s129 = smul.addr %s128, 8
        %s130 = scalar_lea.vmem %s0, %s129
        %s131 = smul.u32 16, %s16
      $region24: #{tpu_custom_call.1} parent=19 // pred_fallthru
        _
    $region20: #{tpu_custom_call.1} parent=5 // pred_fallthru
      _
    %p132 = scmp.le.s32.totalorder 1, %s8
    %p133 = scmp.lt.s32.totalorder %s8, 5
    %p134 = pnand %p132, %p133
    %p135 = pneg %p134
    // Predicated region
    $region25: #{tpu_custom_call.1} parent=5 // pred_check
      _
    $region26: #{tpu_custom_call.1} parent=5 // pred_check_branch
      %137 = sbr.rel (%p134) target = $region28
    $region27: #{tpu_custom_call.1} parent=5 // pred_region
      %s138 = ssub.s32 %s8, 1
      %s139 = smul.u32 16, %s18
      %p140 = scmp.lt.s32.totalorder %s17, 1
      %s141 = scalar_select %p140, %s17, 1
      %p142 = scmp.lt.s32.totalorder %s139, 31
      %s143 = scalar_select %p142, %s139, 31
      %s144 = smul.addr %s141, 32
      %s145 = sadd.s32 %s143, %s144
      %s146 = smul.addr %s145, 8
      %s147 = scalar_lea.vmem %s0, %s146
      %p148 = pneg %p48
      %p149 = pneg %p45
      %p150 = pneg %p69
      %p151 = pneg %p66
      %p152 = pneg %p97
      %p153 = pneg %p94
      %s154 = smul.u32 16, %s18
      %p155 = scmp.lt.s32.totalorder %s17, 1
      %s156 = scalar_select %p155, %s17, 1
      %p157 = scmp.lt.s32.totalorder %s154, 31
      %s158 = scalar_select %p157, %s154, 31
      %s159 = smul.addr %s158, 2
      %s160 = smul.addr %s156, 64
      %s161 = sadd.s32 %s159, %s160
      %s162 = smul.addr %s161, 8
      %s163 = scalar_lea.vmem %s2, %s162
      %s164 = smul.u32 16, %s18
      %p165 = scmp.lt.s32.totalorder %s17, 1
      %s166 = scalar_select %p165, %s17, 1
      %p167 = scmp.lt.s32.totalorder %s164, 31
      %s168 = scalar_select %p167, %s164, 31
      %s169 = smul.addr %s166, 32
      %s170 = sadd.s32 %s168, %s169
      %s171 = smul.addr %s170, 8
      %s172 = scalar_lea.vmem %s0, %s171
      %s173 = smul.u32 16, %s18
      %s174 = smul.u32 16, %s18
      %p175 = scmp.lt.s32.totalorder %s17, 1
      %s176 = scalar_select %p175, %s17, 1
      %p177 = scmp.lt.s32.totalorder %s174, 31
      %s178 = scalar_select %p177, %s174, 31
      %s179 = smul.addr %s178, 2
      %s180 = smul.addr %s176, 64
      %s181 = sadd.s32 %s179, %s180
      %s182 = smul.addr %s181, 8
      %s183 = scalar_lea.vmem %s2, %s182
      %s184 = smul.u32 16, %s18
      %v185 = vld [vmem:[%s172] sm:$0xff]
      %v186 = vld [vmem:[%s172 + $0x8] sm:$0xff]
      %v187 = vld [vmem:[%s172 + $0x10] sm:$0xff]
      %v188 = vld [vmem:[%s172 + $0x18] sm:$0xff]
      %v189 = vld [vmem:[%s172 + $0x20] sm:$0xff]
      %v190 = vld [vmem:[%s172 + $0x28] sm:$0xff]
      %v191 = vld [vmem:[%s172 + $0x30] sm:$0xff]
      %v192 = vld [vmem:[%s172 + $0x38] sm:$0xff]
      %v193 = vld [vmem:[%s172 + $0x40] sm:$0xff]
      %v194 = vld [vmem:[%s172 + $0x48] sm:$0xff]
      %v195 = vld [vmem:[%s172 + $0x50] sm:$0xff]
      %v196 = vld [vmem:[%s172 + $0x58] sm:$0xff]
      %v197 = vld [vmem:[%s172 + $0x60] sm:$0xff]
      %v198 = vld [vmem:[%s172 + $0x68] sm:$0xff]
      %v199 = vld [vmem:[%s172 + $0x70] sm:$0xff]
      %v200 = vld [vmem:[%s172 + $0x78] sm:$0xff]
      %v201 = vld [vmem:[%s1] sm:$0xff]
      %v202 = vld [vmem:[%s1 + $0x8] sm:$0xff]
      %v203 = vld [vmem:[%s1 + $0x10] sm:$0xff]
      %v204 = vld [vmem:[%s1 + $0x18] sm:$0xff]
      %v205 = vld [vmem:[%s1 + $0x20] sm:$0xff]
      %v206 = vld [vmem:[%s1 + $0x28] sm:$0xff]
      %v207 = vld [vmem:[%s1 + $0x30] sm:$0xff]
      %v208 = vld [vmem:[%s1 + $0x38] sm:$0xff]
      %v209 = vld [vmem:[%s1 + $0x40] sm:$0xff]
      %v210 = vld [vmem:[%s1 + $0x48] sm:$0xff]
      %v211 = vld [vmem:[%s1 + $0x50] sm:$0xff]
      %v212 = vld [vmem:[%s1 + $0x58] sm:$0xff]
      %v213 = vld [vmem:[%s1 + $0x60] sm:$0xff]
      %v214 = vld [vmem:[%s1 + $0x68] sm:$0xff]
      %v215 = vld [vmem:[%s1 + $0x70] sm:$0xff]
      %v216 = vld [vmem:[%s1 + $0x78] sm:$0xff]
      %vm217 = vcmask 523264
      %v219 = vsel %vm217, %v185, 0
      %v222 = vsel %vm217, %v186, 0
      %v225 = vsel %vm217, %v187, 0
      %v228 = vsel %vm217, %v188, 0
      %v231 = vsel %vm217, %v189, 0
      %v234 = vsel %vm217, %v190, 0
      %v237 = vsel %vm217, %v191, 0
      %v240 = vsel %vm217, %v192, 0
      %v243 = vsel %vm217, %v193, 0
      %v246 = vsel %vm217, %v194, 0
      %v249 = vsel %vm217, %v195, 0
      %v252 = vsel %vm217, %v196, 0
      %v255 = vsel %vm217, %v197, 0
      %v258 = vsel %vm217, %v198, 0
      %v261 = vsel %vm217, %v199, 0
      %v264 = vsel %vm217, %v200, 0
      %266 = vmatprep.subr.mxu0 0.0
      %267 = vmatpush1.msra.mxu0 0.0
      %268 = vmatprep.subr.mxu0 0.0
      %269 = vmatpush1.msra.mxu0 0.0
      %270 = vmatprep.subr.mxu0 0.0
      %271 = vmatpush1.msra.mxu0 0.0
      %272 = vmatprep.subr.mxu0 0.0
      %273 = vmatpush1.msra.mxu0 0.0
      %274 = vmatprep.subr.mxu0 0.0
      %275 = vmatpush1.msra.mxu0 0.0
      %276 = vmatprep.subr.mxu0 0.0
      %277 = vmatpush1.msra.mxu0 0.0
      %278 = vmatprep.subr.mxu0 0.0
      %279 = vmatpush1.msra.mxu0 0.0
      %280 = vmatprep.subr.mxu0 0.0
      %281 = vmatpush1.msra.mxu0 0.0
      %282 = vmatprep.subr.mxu0 %v216
      %283 = vmatpush1.msra.mxu0 %v215
      %284 = vmatprep.subr.mxu0 %v214
      %285 = vmatpush1.msra.mxu0 %v213
      %286 = vmatprep.subr.mxu0 %v212
      %287 = vmatpush1.msra.mxu0 %v211
      %288 = vmatprep.subr.mxu0 %v210
      %289 = vmatpush1.msra.mxu0 %v209
      %290 = vmatprep.subr.mxu0 %v208
      %291 = vmatpush1.msra.mxu0 %v207
      %292 = vmatprep.subr.mxu0 %v206
      %293 = vmatpush1.msra.mxu0 %v205
      %294 = vmatprep.subr.mxu0 %v204
      %295 = vmatpush1.msra.mxu0 %v203
      %296 = vmatprep.subr.mxu0 %v202
      %297 = vmatpush1.msra.mxu0 %v201
      %298 = vmatprep.subr.mxu0 0.0
      %299 = vmatpush2.msra.mxu0 0.0
      %300 = vmatprep.subr.mxu0 0.0
      %301 = vmatpush2.msra.mxu0 0.0
      %302 = vmatprep.subr.mxu0 0.0
      %303 = vmatpush2.msra.mxu0 0.0
      %304 = vmatprep.subr.mxu0 0.0
      %305 = vmatpush2.msra.mxu0 0.0
      %306 = vmatprep.subr.mxu0 0.0
      %307 = vmatpush2.msra.mxu0 0.0
      %308 = vmatprep.subr.mxu0 0.0
      %309 = vmatpush2.msra.mxu0 0.0
      %310 = vmatprep.subr.mxu0 0.0
      %311 = vmatpush2.msra.mxu0 0.0
      %312 = vmatprep.subr.mxu0 0.0
      %313 = vmatpush2.msra.mxu0 0.0
      %314 = vmatprep.subr.mxu0 0.0
      %315 = vmatpush2.msra.mxu0 0.0
      %316 = vmatprep.subr.mxu0 0.0
      %317 = vmatpush2.msra.mxu0 0.0
      %318 = vmatprep.subr.mxu0 0.0
      %319 = vmatpush2.msra.mxu0 0.0
      %320 = vmatprep.subr.mxu0 0.0
      %321 = vmatpush2.msra.mxu0 0.0
      %322 = vmatprep.subr.mxu0 0.0
      %323 = vmatpush2.msra.mxu0 0.0
      %324 = vmatprep.subr.mxu0 0.0
      %325 = vmatpush2.msra.mxu0 0.0
      %326 = vmatprep.subr.mxu0 0.0
      %327 = vmatpush2.msra.mxu0 0.0
      %328 = vmatprep.subr.mxu0 0.0
      %329 = vmatpush2.msra.mxu0 0.0
      %330 = vmatprep.mubr.f32.mxu0 0.0
      %331 = vmatmul.mubr.f32.gmra.mxu0 %v219
      %v332 = vpop.f32.mrf.mxu0
      %v333 = vadd.f32 0.0, %v332
      %v334 = vpop.f32.mrf.mxu0
      %v335 = vadd.f32 0.0, %v334
      %336 = vmatprep.mubr.f32.mxu0 0.0
      %337 = vmatmul.mubr.f32.gmra.mxu0 %v222
      %v338 = vpop.f32.mrf.mxu0
      %v339 = vadd.f32 0.0, %v338
      %v340 = vpop.f32.mrf.mxu0
      %v341 = vadd.f32 0.0, %v340
      %342 = vmatprep.mubr.f32.mxu0 0.0
      %343 = vmatmul.mubr.f32.gmra.mxu0 %v225
      %v344 = vpop.f32.mrf.mxu0
      %v345 = vadd.f32 0.0, %v344
      %v346 = vpop.f32.mrf.mxu0
      %v347 = vadd.f32 0.0, %v346
      %348 = vmatprep.mubr.f32.mxu0 0.0
      %349 = vmatmul.mubr.f32.gmra.mxu0 %v228
      %v350 = vpop.f32.mrf.mxu0
      %v351 = vadd.f32 0.0, %v350
      %v352 = vpop.f32.mrf.mxu0
      %v353 = vadd.f32 0.0, %v352
      %354 = vmatprep.mubr.f32.mxu0 0.0
      %355 = vmatmul.mubr.f32.gmra.mxu0 %v231
      %v356 = vpop.f32.mrf.mxu0
      %v357 = vadd.f32 0.0, %v356
      %v358 = vpop.f32.mrf.mxu0
      %v359 = vadd.f32 0.0, %v358
      %360 = vmatprep.mubr.f32.mxu0 0.0
      %361 = vmatmul.mubr.f32.gmra.mxu0 %v234
      %v362 = vpop.f32.mrf.mxu0
      %v363 = vadd.f32 0.0, %v362
      %v364 = vpop.f32.mrf.mxu0
      %v365 = vadd.f32 0.0, %v364
      %366 = vmatprep.mubr.f32.mxu0 0.0
      %367 = vmatmul.mubr.f32.gmra.mxu0 %v237
      %v368 = vpop.f32.mrf.mxu0
      %v369 = vadd.f32 0.0, %v368
      %v370 = vpop.f32.mrf.mxu0
      %v371 = vadd.f32 0.0, %v370
      %372 = vmatprep.mubr.f32.mxu0 0.0
      %373 = vmatmul.mubr.f32.gmra.mxu0 %v240
      %v374 = vpop.f32.mrf.mxu0
      %v375 = vadd.f32 0.0, %v374
      %v376 = vpop.f32.mrf.mxu0
      %v377 = vadd.f32 0.0, %v376
      %378 = vmatprep.mubr.f32.mxu0 0.0
      %379 = vmatmul.mubr.f32.gmra.mxu0 %v243
      %v380 = vpop.f32.mrf.mxu0
      %v381 = vadd.f32 0.0, %v380
      %v382 = vpop.f32.mrf.mxu0
      %v383 = vadd.f32 0.0, %v382
      %384 = vmatprep.mubr.f32.mxu0 0.0
      %385 = vmatmul.mubr.f32.gmra.mxu0 %v246
      %v386 = vpop.f32.mrf.mxu0
      %v387 = vadd.f32 0.0, %v386
      %v388 = vpop.f32.mrf.mxu0
      %v389 = vadd.f32 0.0, %v388
      %390 = vmatprep.mubr.f32.mxu0 0.0
      %391 = vmatmul.mubr.f32.gmra.mxu0 %v249
      %v392 = vpop.f32.mrf.mxu0
      %v393 = vadd.f32 0.0, %v392
      %v394 = vpop.f32.mrf.mxu0
      %v395 = vadd.f32 0.0, %v394
      %396 = vmatprep.mubr.f32.mxu0 0.0
      %397 = vmatmul.mubr.f32.gmra.mxu0 %v252
      %v398 = vpop.f32.mrf.mxu0
      %v399 = vadd.f32 0.0, %v398
      %v400 = vpop.f32.mrf.mxu0
      %v401 = vadd.f32 0.0, %v400
      %402 = vmatprep.mubr.f32.mxu0 0.0
      %403 = vmatmul.mubr.f32.gmra.mxu0 %v255
      %v404 = vpop.f32.mrf.mxu0
      %v405 = vadd.f32 0.0, %v404
      %v406 = vpop.f32.mrf.mxu0
      %v407 = vadd.f32 0.0, %v406
      %408 = vmatprep.mubr.f32.mxu0 0.0
      %409 = vmatmul.mubr.f32.gmra.mxu0 %v258
      %v410 = vpop.f32.mrf.mxu0
      %v411 = vadd.f32 0.0, %v410
      %v412 = vpop.f32.mrf.mxu0
      %v413 = vadd.f32 0.0, %v412
      %414 = vmatprep.mubr.f32.mxu0 0.0
      %415 = vmatmul.mubr.f32.gmra.mxu0 %v261
      %v416 = vpop.f32.mrf.mxu0
      %v417 = vadd.f32 0.0, %v416
      %v418 = vpop.f32.mrf.mxu0
      %v419 = vadd.f32 0.0, %v418
      %420 = vmatprep.mubr.f32.mxu0 0.0
      %421 = vmatmul.mubr.f32.gmra.mxu0 %v264
      %v422 = vpop.f32.mrf.mxu0
      %v423 = vadd.f32 0.0, %v422
      %v424 = vpop.f32.mrf.mxu0
      %v425 = vadd.f32 0.0, %v424
      %426 = vdwg.mxu0
      %427 = vst [vmem:[%s183] sm:$0xff] %v333
      %428 = vst.msk [vmem:[%s183 + $0x8] sm:$0xff] %vm217, %v335
      %429 = vst [vmem:[%s183 + $0x10] sm:$0xff] %v339
      %430 = vst.msk [vmem:[%s183 + $0x18] sm:$0xff] %vm217, %v341
      %431 = vst [vmem:[%s183 + $0x20] sm:$0xff] %v345
      %432 = vst.msk [vmem:[%s183 + $0x28] sm:$0xff] %vm217, %v347
      %433 = vst [vmem:[%s183 + $0x30] sm:$0xff] %v351
      %434 = vst.msk [vmem:[%s183 + $0x38] sm:$0xff] %vm217, %v353
      %435 = vst [vmem:[%s183 + $0x40] sm:$0xff] %v357
      %436 = vst.msk [vmem:[%s183 + $0x48] sm:$0xff] %vm217, %v359
      %437 = vst [vmem:[%s183 + $0x50] sm:$0xff] %v363
      %438 = vst.msk [vmem:[%s183 + $0x58] sm:$0xff] %vm217, %v365
      %439 = vst [vmem:[%s183 + $0x60] sm:$0xff] %v369
      %440 = vst.msk [vmem:[%s183 + $0x68] sm:$0xff] %vm217, %v371
      %441 = vst [vmem:[%s183 + $0x70] sm:$0xff] %v375
      %442 = vst.msk [vmem:[%s183 + $0x78] sm:$0xff] %vm217, %v377
      %443 = vst [vmem:[%s183 + $0x80] sm:$0xff] %v381
      %444 = vst.msk [vmem:[%s183 + $0x88] sm:$0xff] %vm217, %v383
      %445 = vst [vmem:[%s183 + $0x90] sm:$0xff] %v387
      %446 = vst.msk [vmem:[%s183 + $0x98] sm:$0xff] %vm217, %v389
      %447 = vst [vmem:[%s183 + $0xa0] sm:$0xff] %v393
      %448 = vst.msk [vmem:[%s183 + $0xa8] sm:$0xff] %vm217, %v395
      %449 = vst [vmem:[%s183 + $0xb0] sm:$0xff] %v399
      %450 = vst.msk [vmem:[%s183 + $0xb8] sm:$0xff] %vm217, %v401
      %451 = vst [vmem:[%s183 + $0xc0] sm:$0xff] %v405
      %452 = vst.msk [vmem:[%s183 + $0xc8] sm:$0xff] %vm217, %v407
      %453 = vst [vmem:[%s183 + $0xd0] sm:$0xff] %v411
      %454 = vst.msk [vmem:[%s183 + $0xd8] sm:$0xff] %vm217, %v413
      %455 = vst [vmem:[%s183 + $0xe0] sm:$0xff] %v417
      %456 = vst.msk [vmem:[%s183 + $0xe8] sm:$0xff] %vm217, %v419
      %457 = vst [vmem:[%s183 + $0xf0] sm:$0xff] %v423
      %458 = vst.msk [vmem:[%s183 + $0xf8] sm:$0xff] %vm217, %v425
      %s459 = smul.u32 16, %s18
      %p460 = scmp.lt.s32.totalorder %s17, 1
      %s461 = scalar_select %p460, %s17, 1
      %p462 = scmp.lt.s32.totalorder %s459, 31
      %s463 = scalar_select %p462, %s459, 31
      %s464 = smul.addr %s463, 2
      %s465 = smul.addr %s461, 64
      %s466 = sadd.s32 %s464, %s465
      %s467 = smul.addr %s466, 8
      %s468 = scalar_lea.vmem %s2, %s467
      // Predicated region
      $region29: #{tpu_custom_call.1} parent=27 // pred_check
        %p469 = pneg %p94
      $region30: #{tpu_custom_call.1} parent=27 // pred_check_branch
        %471 = sbr.rel (%p469) target = $region32
      $region31: #{tpu_custom_call.1} parent=27 // pred_region
        %s472 = smul.u32 16, %s18
      $region32: #{tpu_custom_call.1} parent=27 // pred_fallthru
        _
    $region28: #{tpu_custom_call.1} parent=5 // pred_fallthru
      _
    %p473 = scmp.le.s32.totalorder 2, %s8
    // Predicated region
    $region33: #{tpu_custom_call.1} parent=5 // pred_check
      %p474 = pneg %p473
    $region34: #{tpu_custom_call.1} parent=5 // pred_check_branch
      %476 = sbr.rel (%p474) target = $region36
    $region35: #{tpu_custom_call.1} parent=5 // pred_region
      %s477 = ssub.s32 %s8, 2
      // Predicated region
      $region37: #{tpu_custom_call.1} parent=35 // pred_check
        %p478 = pneg %p100
      $region38: #{tpu_custom_call.1} parent=35 // pred_check_branch
        %480 = sbr.rel (%p478) target = $region40
      $region39: #{tpu_custom_call.1} parent=35 // pred_region
        %s481 = smul.u32 16, %s20
        %p482 = scmp.lt.s32.totalorder %s19, 1
        %s483 = scalar_select %p482, %s19, 1
        %p484 = scmp.lt.s32.totalorder %s481, 31
        %s485 = scalar_select %p484, %s481, 31
        %s486 = smul.addr %s485, 2
        %s487 = smul.addr %s483, 64
        %s488 = sadd.s32 %s486, %s487
        %s489 = smul.addr %s488, 8
        %s490 = scalar_lea.vmem %s2, %s489
      $region40: #{tpu_custom_call.1} parent=35 // pred_fallthru
        _
    $region36: #{tpu_custom_call.1} parent=5 // pred_fallthru
      _
  $region6: #{tpu_custom_call.1} parent=0 // loop_footer
    %s12 = sadd.s32 1, %s8
  $region7: #{tpu_custom_call.1} parent=0 // loop_footer_branch
    %7 = sbr.rel target = $region3
  $region8: #{tpu_custom_call.1} parent=0 // loop_exit
    _

// kernel: tpu_custom_call.1
$region0: #{tpu_custom_call.1}
  #allocation0 [shape = 'u32[]', space=smem, size = 0x4, offset = 0x4, fixed_abs, tag = 'smem constant byte address 0x4 - core index']
  #allocation1 [shape = 'u32[144,128]{1,0:T(1,128)}', space=vmem, size = 0x12000, scoped, tag = 'internal scratch']
  %s0 = inlined_call_operand.vmem [shape: f32[2,256,64], index: 0, kind: input, shape index: {}]
  %s1 = inlined_call_operand.vmem [shape: f32[64,192], index: 1, kind: input, shape index: {}]
  %s2 = inlined_call_operand.vmem [shape: f32[2,256,192], index: 2, kind: output, shape index: {}]
  %s3 = sld [smem:[#allocation0]]
  $region41: #{tpu_custom_call.1} parent=0
    _
  %s5 = ssub.s32 1, %s3
  %s6 = scalar_select 0, %s5, %s3
  loop: start=0, step=1, limit=6
  $region2: #{tpu_custom_call.1} parent=0 // loop_pre_header
    _
  $region3: #{tpu_custom_call.1} parent=0 // loop_header
    %s8 = sphi 0, %s12
    %p9 = scmp.ge.s32.totalorder %s8, 6
    %s15 = sphi 0, %s27
    %s16 = sphi 0, %s23
    %s17 = sphi 0, %s15
    %s18 = sphi 0, %s16
    %s19 = sphi 0, %s17
    %s20 = sphi 0, %s18
    %s32 = sphi 0, %s34
    %s35 = sphi 0, %s32
    %s36 = sphi 0, %s35
    %s52 = sphi 0, %s36
    %s56 = sphi 0, %s56
    %s58 = sphi 0, %s56
    %s59 = sphi 0, %s58
    %s73 = sphi 0, %s59
    %s81 = sphi 0, %s83
    %s84 = sphi 0, %s81
    %s85 = sphi 0, %s84
    %s101 = sphi 0, %s85
  $region4: #{tpu_custom_call.1} parent=0 // loop_header_branch
    %11 = sbr.rel (%p9) target = $region8
  $region5: #{tpu_custom_call.1} parent=0 // loop_body
    %s13 = ssub.s32 %s8, 1
    %s14 = ssub.s32 %s8, 2
    %s21 = sadd.s32 1, %s16
    %p22 = scmp.ge.s32.totalorder %s21, 2
    %s23 = scalar_select %p22, 0, %s21
    %s24 = sadd.s32 1, %s15
    %s25 = scalar_select %p22, %s24, %s15
    %p26 = scmp.ge.s32.totalorder %s25, 2
    %s27 = scalar_select %p26, 0, %s25
    %s28 = ssub.s32 %s15, %s27
    %s29 = ssub.s32 %s16, %s23
    %s30 = sor.u32 %s28, %s29
    %p31 = scmp.eq.s32.totalorder %s30, 0
    %s33 = sadd.s32 %s32, 1
    %s34 = scalar_select %p31, %s32, %s33
    %p37 = pneg %p31
    %p38 = scmp.eq.s32.totalorder %s8, 3
    %p39 = por %p37, %p38
    %p40 = scmp.ne.s32.totalorder %s32, %s35
    %p41 = scmp.eq.s32.totalorder %s8, 0
    %p42 = por %p40, %p41
    %p43 = scmp.ne.s32.totalorder %s32, %s35
    %p44 = scmp.eq.s32.totalorder %s13, 3
    %p45 = por %p43, %p44
    %p46 = scmp.ne.s32.totalorder %s35, %s36
    %p47 = scmp.eq.s32.totalorder %s13, 0
    %p48 = por %p46, %p47
    %p49 = scmp.ne.s32.totalorder %s35, %s36
    %p50 = scmp.eq.s32.totalorder %s14, 3
    %p51 = por %p49, %p50
    %p53 = scmp.ne.s32.totalorder %s36, %s52
    %p54 = scmp.eq.s32.totalorder %s14, 0
    %p55 = por %p53, %p54
    %s57 = sadd.s32 %s56, 1
    %p60 = scmp.eq.s32.totalorder %s8, 3
    %p61 = scmp.ne.s32.totalorder %s56, %s58
    %p62 = scmp.eq.s32.totalorder %s8, 0
    %p63 = por %p61, %p62
    %p64 = scmp.ne.s32.totalorder %s56, %s58
    %p65 = scmp.eq.s32.totalorder %s13, 3
    %p66 = por %p64, %p65
    %p67 = scmp.ne.s32.totalorder %s58, %s59
    %p68 = scmp.eq.s32.totalorder %s13, 0
    %p69 = por %p67, %p68
    %p70 = scmp.ne.s32.totalorder %s58, %s59
    %p71 = scmp.eq.s32.totalorder %s14, 3
    %p72 = por %p70, %p71
    %p74 = scmp.ne.s32.totalorder %s59, %s73
    %p75 = scmp.eq.s32.totalorder %s14, 0
    %p76 = por %p74, %p75
    %s77 = ssub.s32 %s15, %s27
    %s78 = ssub.s32 %s16, %s23
    %s79 = sor.u32 %s77, %s78
    %p80 = scmp.eq.s32.totalorder %s79, 0
    %s82 = sadd.s32 %s81, 1
    %s83 = scalar_select %p80, %s81, %s82
    %p86 = pneg %p80
    %p87 = scmp.eq.s32.totalorder %s8, 3
    %p88 = por %p86, %p87
    %p89 = scmp.ne.s32.totalorder %s81, %s84
    %p90 = scmp.eq.s32.totalorder %s8, 0
    %p91 = por %p89, %p90
    %p92 = scmp.ne.s32.totalorder %s81, %s84
    %p93 = scmp.eq.s32.totalorder %s13, 3
    %p94 = por %p92, %p93
    %p95 = scmp.ne.s32.totalorder %s84, %s85
    %p96 = scmp.eq.s32.totalorder %s13, 0
    %p97 = por %p95, %p96
    %p98 = scmp.ne.s32.totalorder %s84, %s85
    %p99 = scmp.eq.s32.totalorder %s14, 3
    %p100 = por %p98, %p99
    %p102 = scmp.ne.s32.totalorder %s85, %s101
    %p103 = scmp.eq.s32.totalorder %s14, 0
    %p104 = por %p102, %p103
    %p105 = scmp.le.s32.totalorder 1, %s8
    %p106 = scmp.lt.s32.totalorder %s8, 5
    %p107 = pnand %p105, %p106
    %p108 = pneg %p107
    // Predicated region
    $region9: #{tpu_custom_call.1} parent=5 // pred_check
      _
    $region10: #{tpu_custom_call.1} parent=5 // pred_check_branch
      %110 = sbr.rel (%p107) target = $region12
    $region11: #{tpu_custom_call.1} parent=5 // pred_region
      %s111 = ssub.s32 %s8, 1
      // Predicated region
      $region13: #{tpu_custom_call.1} parent=11 // pred_check
        %p112 = pneg %p69
      $region14: #{tpu_custom_call.1} parent=11 // pred_check_branch
        %114 = sbr.rel (%p112) target = $region16
      $region15: #{tpu_custom_call.1} parent=11 // pred_region
        _
      $region16: #{tpu_custom_call.1} parent=11 // pred_fallthru
        _
    $region12: #{tpu_custom_call.1} parent=5 // pred_fallthru
      _
    %p115 = scmp.lt.s32.totalorder %s8, 4
    // Predicated region
    $region17: #{tpu_custom_call.1} parent=5 // pred_check
      %p116 = pneg %p115
    $region18: #{tpu_custom_call.1} parent=5 // pred_check_branch
      %118 = sbr.rel (%p116) target = $region20
    $region19: #{tpu_custom_call.1} parent=5 // pred_region
      // Predicated region
      $region21: #{tpu_custom_call.1} parent=19 // pred_check
        %p119 = pneg %p42
      $region22: #{tpu_custom_call.1} parent=19 // pred_check_branch
        %121 = sbr.rel (%p119) target = $region24
      $region23: #{tpu_custom_call.1} parent=19 // pred_region
        %s122 = smul.u32 16, %s16
        %p123 = scmp.lt.s32.totalorder %s15, 1
        %s124 = scalar_select %p123, %s15, 1
        %p125 = scmp.lt.s32.totalorder %s122, 31
        %s126 = scalar_select %p125, %s122, 31
        %s127 = smul.addr %s124, 32
        %s128 = sadd.s32 %s126, %s127
        %s129 = smul.addr %s128, 8
        %s130 = scalar_lea.vmem %s0, %s129
        %s131 = smul.u32 16, %s16
      $region24: #{tpu_custom_call.1} parent=19 // pred_fallthru
        _
    $region20: #{tpu_custom_call.1} parent=5 // pred_fallthru
      _
    %p132 = scmp.le.s32.totalorder 1, %s8
    %p133 = scmp.lt.s32.totalorder %s8, 5
    %p134 = pnand %p132, %p133
    %p135 = pneg %p134
    // Predicated region
    $region25: #{tpu_custom_call.1} parent=5 // pred_check
      _
    $region26: #{tpu_custom_call.1} parent=5 // pred_check_branch
      %137 = sbr.rel (%p134) target = $region28
    $region27: #{tpu_custom_call.1} parent=5 // pred_region
      %s138 = ssub.s32 %s8, 1
      %s139 = smul.u32 16, %s18
      %p140 = scmp.lt.s32.totalorder %s17, 1
      %s141 = scalar_select %p140, %s17, 1
      %p142 = scmp.lt.s32.totalorder %s139, 31
      %s143 = scalar_select %p142, %s139, 31
      %s144 = smul.addr %s141, 32
      %s145 = sadd.s32 %s143, %s144
      %s146 = smul.addr %s145, 8
      %s147 = scalar_lea.vmem %s0, %s146
      %p148 = pneg %p48
      %p149 = pneg %p45
      %p150 = pneg %p69
      %p151 = pneg %p66
      %p152 = pneg %p97
      %p153 = pneg %p94
      %s154 = smul.u32 16, %s18
      %p155 = scmp.lt.s32.totalorder %s17, 1
      %s156 = scalar_select %p155, %s17, 1
      %p157 = scmp.lt.s32.totalorder %s154, 31
      %s158 = scalar_select %p157, %s154, 31
      %s159 = smul.addr %s158, 2
      %s160 = smul.addr %s156, 64
      %s161 = sadd.s32 %s159, %s160
      %s162 = smul.addr %s161, 8
      %s163 = scalar_lea.vmem %s2, %s162
      %s164 = smul.u32 16, %s18
      %p165 = scmp.lt.s32.totalorder %s17, 1
      %s166 = scalar_select %p165, %s17, 1
      %p167 = scmp.lt.s32.totalorder %s164, 31
      %s168 = scalar_select %p167, %s164, 31
      %s169 = smul.addr %s166, 32
      %s170 = sadd.s32 %s168, %s169
      %s171 = smul.addr %s170, 8
      %s172 = scalar_lea.vmem %s0, %s171
      %s173 = smul.u32 16, %s18
      %s174 = smul.u32 16, %s18
      %p175 = scmp.lt.s32.totalorder %s17, 1
      %s176 = scalar_select %p175, %s17, 1
      %p177 = scmp.lt.s32.totalorder %s174, 31
      %s178 = scalar_select %p177, %s174, 31
      %s179 = smul.addr %s178, 2
      %s180 = smul.addr %s176, 64
      %s181 = sadd.s32 %s179, %s180
      %s182 = smul.addr %s181, 8
      %s183 = scalar_lea.vmem %s2, %s182
      %s184 = smul.u32 16, %s18
      %v185 = vld [vmem:[%s172] sm:$0xff]
      %v186 = vld [vmem:[%s172 + $0x8] sm:$0xff]
      %v187 = vld [vmem:[%s172 + $0x10] sm:$0xff]
      %v188 = vld [vmem:[%s172 + $0x18] sm:$0xff]
      %v189 = vld [vmem:[%s172 + $0x20] sm:$0xff]
      %v190 = vld [vmem:[%s172 + $0x28] sm:$0xff]
      %v191 = vld [vmem:[%s172 + $0x30] sm:$0xff]
      %v192 = vld [vmem:[%s172 + $0x38] sm:$0xff]
      %v193 = vld [vmem:[%s172 + $0x40] sm:$0xff]
      %v194 = vld [vmem:[%s172 + $0x48] sm:$0xff]
      %v195 = vld [vmem:[%s172 + $0x50] sm:$0xff]
      %v196 = vld [vmem:[%s172 + $0x58] sm:$0xff]
      %v197 = vld [vmem:[%s172 + $0x60] sm:$0xff]
      %v198 = vld [vmem:[%s172 + $0x68] sm:$0xff]
      %v199 = vld [vmem:[%s172 + $0x70] sm:$0xff]
      %v200 = vld [vmem:[%s172 + $0x78] sm:$0xff]
      %v201 = vld [vmem:[%s1] sm:$0xff]
      %v202 = vld [vmem:[%s1 + $0x8] sm:$0xff]
      %v203 = vld [vmem:[%s1 + $0x10] sm:$0xff]
      %v204 = vld [vmem:[%s1 + $0x18] sm:$0xff]
      %v205 = vld [vmem:[%s1 + $0x20] sm:$0xff]
      %v206 = vld [vmem:[%s1 + $0x28] sm:$0xff]
      %v207 = vld [vmem:[%s1 + $0x30] sm:$0xff]
      %v208 = vld [vmem:[%s1 + $0x38] sm:$0xff]
      %v209 = vld [vmem:[%s1 + $0x40] sm:$0xff]
      %v210 = vld [vmem:[%s1 + $0x48] sm:$0xff]
      %v211 = vld [vmem:[%s1 + $0x50] sm:$0xff]
      %v212 = vld [vmem:[%s1 + $0x58] sm:$0xff]
      %v213 = vld [vmem:[%s1 + $0x60] sm:$0xff]
      %v214 = vld [vmem:[%s1 + $0x68] sm:$0xff]
      %v215 = vld [vmem:[%s1 + $0x70] sm:$0xff]
      %v216 = vld [vmem:[%s1 + $0x78] sm:$0xff]
      %vm217 = vcmask 523264
      %v219 = vsel %vm217, %v185, 0
      %v222 = vsel %vm217, %v186, 0
      %v225 = vsel %vm217, %v187, 0
      %v228 = vsel %vm217, %v188, 0
      %v231 = vsel %vm217, %v189, 0
      %v234 = vsel %vm217, %v190, 0
      %v237 = vsel %vm217, %v191, 0
      %v240 = vsel %vm217, %v192, 0
      %v243 = vsel %vm217, %v193, 0
      %v246 = vsel %vm217, %v194, 0
      %v249 = vsel %vm217, %v195, 0
      %v252 = vsel %vm217, %v196, 0
      %v255 = vsel %vm217, %v197, 0
      %v258 = vsel %vm217, %v198, 0
      %v261 = vsel %vm217, %v199, 0
      %v264 = vsel %vm217, %v200, 0
      %266 = vmatprep.subr.mxu0 0.0
      %267 = vmatpush1.msra.mxu0 0.0
      %268 = vmatprep.subr.mxu0 0.0
      %269 = vmatpush1.msra.mxu0 0.0
      %270 = vmatprep.subr.mxu0 0.0
      %271 = vmatpush1.msra.mxu0 0.0
      %272 = vmatprep.subr.mxu0 0.0
      %273 = vmatpush1.msra.mxu0 0.0
      %274 = vmatprep.subr.mxu0 0.0
      %275 = vmatpush1.msra.mxu0 0.0
      %276 = vmatprep.subr.mxu0 0.0
      %277 = vmatpush1.msra.mxu0 0.0
      %278 = vmatprep.subr.mxu0 0.0
      %279 = vmatpush1.msra.mxu0 0.0
      %280 = vmatprep.subr.mxu0 0.0
      %281 = vmatpush1.msra.mxu0 0.0
      %282 = vmatprep.subr.mxu0 %v216
      %283 = vmatpush1.msra.mxu0 %v215
      %284 = vmatprep.subr.mxu0 %v214
      %285 = vmatpush1.msra.mxu0 %v213
      %286 = vmatprep.subr.mxu0 %v212
      %287 = vmatpush1.msra.mxu0 %v211
      %288 = vmatprep.subr.mxu0 %v210
      %289 = vmatpush1.msra.mxu0 %v209
      %290 = vmatprep.subr.mxu0 %v208
      %291 = vmatpush1.msra.mxu0 %v207
      %292 = vmatprep.subr.mxu0 %v206
      %293 = vmatpush1.msra.mxu0 %v205
      %294 = vmatprep.subr.mxu0 %v204
      %295 = vmatpush1.msra.mxu0 %v203
      %296 = vmatprep.subr.mxu0 %v202
      %297 = vmatpush1.msra.mxu0 %v201
      %298 = vmatprep.subr.mxu0 0.0
      %299 = vmatpush2.msra.mxu0 0.0
      %300 = vmatprep.subr.mxu0 0.0
      %301 = vmatpush2.msra.mxu0 0.0
      %302 = vmatprep.subr.mxu0 0.0
      %303 = vmatpush2.msra.mxu0 0.0
      %304 = vmatprep.subr.mxu0 0.0
      %305 = vmatpush2.msra.mxu0 0.0
      %306 = vmatprep.subr.mxu0 0.0
      %307 = vmatpush2.msra.mxu0 0.0
      %308 = vmatprep.subr.mxu0 0.0
      %309 = vmatpush2.msra.mxu0 0.0
      %310 = vmatprep.subr.mxu0 0.0
      %311 = vmatpush2.msra.mxu0 0.0
      %312 = vmatprep.subr.mxu0 0.0
      %313 = vmatpush2.msra.mxu0 0.0
      %314 = vmatprep.subr.mxu0 0.0
      %315 = vmatpush2.msra.mxu0 0.0
      %316 = vmatprep.subr.mxu0 0.0
      %317 = vmatpush2.msra.mxu0 0.0
      %318 = vmatprep.subr.mxu0 0.0
      %319 = vmatpush2.msra.mxu0 0.0
      %320 = vmatprep.subr.mxu0 0.0
      %321 = vmatpush2.msra.mxu0 0.0
      %322 = vmatprep.subr.mxu0 0.0
      %323 = vmatpush2.msra.mxu0 0.0
      %324 = vmatprep.subr.mxu0 0.0
      %325 = vmatpush2.msra.mxu0 0.0
      %326 = vmatprep.subr.mxu0 0.0
      %327 = vmatpush2.msra.mxu0 0.0
      %328 = vmatprep.subr.mxu0 0.0
      %329 = vmatpush2.msra.mxu0 0.0
      %330 = vmatprep.mubr.f32.mxu0 0.0
      %331 = vmatmul.mubr.f32.gmra.mxu0 %v219
      %v332 = vpop.f32.mrf.mxu0
      %v333 = vadd.f32 0.0, %v332
      %v334 = vpop.f32.mrf.mxu0
      %v335 = vadd.f32 0.0, %v334
      %336 = vmatprep.mubr.f32.mxu0 0.0
      %337 = vmatmul.mubr.f32.gmra.mxu0 %v222
      %v338 = vpop.f32.mrf.mxu0
      %v339 = vadd.f32 0.0, %v338
      %v340 = vpop.f32.mrf.mxu0
      %v341 = vadd.f32 0.0, %v340
      %342 = vmatprep.mubr.f32.mxu0 0.0
      %343 = vmatmul.mubr.f32.gmra.mxu0 %v225
      %v344 = vpop.f32.mrf.mxu0
      %v345 = vadd.f32 0.0, %v344
      %v346 = vpop.f32.mrf.mxu0
      %v347 = vadd.f32 0.0, %v346
      %348 = vmatprep.mubr.f32.mxu0 0.0
      %349 = vmatmul.mubr.f32.gmra.mxu0 %v228
      %v350 = vpop.f32.mrf.mxu0
      %v351 = vadd.f32 0.0, %v350
      %v352 = vpop.f32.mrf.mxu0
      %v353 = vadd.f32 0.0, %v352
      %354 = vmatprep.mubr.f32.mxu0 0.0
      %355 = vmatmul.mubr.f32.gmra.mxu0 %v231
      %v356 = vpop.f32.mrf.mxu0
      %v357 = vadd.f32 0.0, %v356
      %v358 = vpop.f32.mrf.mxu0
      %v359 = vadd.f32 0.0, %v358
      %360 = vmatprep.mubr.f32.mxu0 0.0
      %361 = vmatmul.mubr.f32.gmra.mxu0 %v234
      %v362 = vpop.f32.mrf.mxu0
      %v363 = vadd.f32 0.0, %v362
      %v364 = vpop.f32.mrf.mxu0
      %v365 = vadd.f32 0.0, %v364
      %366 = vmatprep.mubr.f32.mxu0 0.0
      %367 = vmatmul.mubr.f32.gmra.mxu0 %v237
      %v368 = vpop.f32.mrf.mxu0
      %v369 = vadd.f32 0.0, %v368
      %v370 = vpop.f32.mrf.mxu0
      %v371 = vadd.f32 0.0, %v370
      %372 = vmatprep.mubr.f32.mxu0 0.0
      %373 = vmatmul.mubr.f32.gmra.mxu0 %v240
      %v374 = vpop.f32.mrf.mxu0
      %v375 = vadd.f32 0.0, %v374
      %v376 = vpop.f32.mrf.mxu0
      %v377 = vadd.f32 0.0, %v376
      %378 = vmatprep.mubr.f32.mxu0 0.0
      %379 = vmatmul.mubr.f32.gmra.mxu0 %v243
      %v380 = vpop.f32.mrf.mxu0
      %v381 = vadd.f32 0.0, %v380
      %v382 = vpop.f32.mrf.mxu0
      %v383 = vadd.f32 0.0, %v382
      %384 = vmatprep.mubr.f32.mxu0 0.0
      %385 = vmatmul.mubr.f32.gmra.mxu0 %v246
      %v386 = vpop.f32.mrf.mxu0
      %v387 = vadd.f32 0.0, %v386
      %v388 = vpop.f32.mrf.mxu0
      %v389 = vadd.f32 0.0, %v388
      %390 = vmatprep.mubr.f32.mxu0 0.0
      %391 = vmatmul.mubr.f32.gmra.mxu0 %v249
      %v392 = vpop.f32.mrf.mxu0
      %v393 = vadd.f32 0.0, %v392
      %v394 = vpop.f32.mrf.mxu0
      %v395 = vadd.f32 0.0, %v394
      %396 = vmatprep.mubr.f32.mxu0 0.0
      %397 = vmatmul.mubr.f32.gmra.mxu0 %v252
      %v398 = vpop.f32.mrf.mxu0
      %v399 = vadd.f32 0.0, %v398
      %v400 = vpop.f32.mrf.mxu0
      %v401 = vadd.f32 0.0, %v400
      %402 = vmatprep.mubr.f32.mxu0 0.0
      %403 = vmatmul.mubr.f32.gmra.mxu0 %v255
      %v404 = vpop.f32.mrf.mxu0
      %v405 = vadd.f32 0.0, %v404
      %v406 = vpop.f32.mrf.mxu0
      %v407 = vadd.f32 0.0, %v406
      %408 = vmatprep.mubr.f32.mxu0 0.0
      %409 = vmatmul.mubr.f32.gmra.mxu0 %v258
      %v410 = vpop.f32.mrf.mxu0
      %v411 = vadd.f32 0.0, %v410
      %v412 = vpop.f32.mrf.mxu0
      %v413 = vadd.f32 0.0, %v412
      %414 = vmatprep.mubr.f32.mxu0 0.0
      %415 = vmatmul.mubr.f32.gmra.mxu0 %v261
      %v416 = vpop.f32.mrf.mxu0
      %v417 = vadd.f32 0.0, %v416
      %v418 = vpop.f32.mrf.mxu0
      %v419 = vadd.f32 0.0, %v418
      %420 = vmatprep.mubr.f32.mxu0 0.0
      %421 = vmatmul.mubr.f32.gmra.mxu0 %v264
      %v422 = vpop.f32.mrf.mxu0
      %v423 = vadd.f32 0.0, %v422
      %v424 = vpop.f32.mrf.mxu0
      %v425 = vadd.f32 0.0, %v424
      %426 = vdwg.mxu0
      %427 = vst [vmem:[%s183] sm:$0xff] %v333
      %428 = vst.msk [vmem:[%s183 + $0x8] sm:$0xff] %vm217, %v335
      %429 = vst [vmem:[%s183 + $0x10] sm:$0xff] %v339
      %430 = vst.msk [vmem:[%s183 + $0x18] sm:$0xff] %vm217, %v341
      %431 = vst [vmem:[%s183 + $0x20] sm:$0xff] %v345
      %432 = vst.msk [vmem:[%s183 + $0x28] sm:$0xff] %vm217, %v347
      %433 = vst [vmem:[%s183 + $0x30] sm:$0xff] %v351
      %434 = vst.msk [vmem:[%s183 + $0x38] sm:$0xff] %vm217, %v353
      %435 = vst [vmem:[%s183 + $0x40] sm:$0xff] %v357
      %436 = vst.msk [vmem:[%s183 + $0x48] sm:$0xff] %vm217, %v359
      %437 = vst [vmem:[%s183 + $0x50] sm:$0xff] %v363
      %438 = vst.msk [vmem:[%s183 + $0x58] sm:$0xff] %vm217, %v365
      %439 = vst [vmem:[%s183 + $0x60] sm:$0xff] %v369
      %440 = vst.msk [vmem:[%s183 + $0x68] sm:$0xff] %vm217, %v371
      %441 = vst [vmem:[%s183 + $0x70] sm:$0xff] %v375
      %442 = vst.msk [vmem:[%s183 + $0x78] sm:$0xff] %vm217, %v377
      %443 = vst [vmem:[%s183 + $0x80] sm:$0xff] %v381
      %444 = vst.msk [vmem:[%s183 + $0x88] sm:$0xff] %vm217, %v383
      %445 = vst [vmem:[%s183 + $0x90] sm:$0xff] %v387
      %446 = vst.msk [vmem:[%s183 + $0x98] sm:$0xff] %vm217, %v389
      %447 = vst [vmem:[%s183 + $0xa0] sm:$0xff] %v393
      %448 = vst.msk [vmem:[%s183 + $0xa8] sm:$0xff] %vm217, %v395
      %449 = vst [vmem:[%s183 + $0xb0] sm:$0xff] %v399
      %450 = vst.msk [vmem:[%s183 + $0xb8] sm:$0xff] %vm217, %v401
      %451 = vst [vmem:[%s183 + $0xc0] sm:$0xff] %v405
      %452 = vst.msk [vmem:[%s183 + $0xc8] sm:$0xff] %vm217, %v407
      %453 = vst [vmem:[%s183 + $0xd0] sm:$0xff] %v411
      %454 = vst.msk [vmem:[%s183 + $0xd8] sm:$0xff] %vm217, %v413
      %455 = vst [vmem:[%s183 + $0xe0] sm:$0xff] %v417
      %456 = vst.msk [vmem:[%s183 + $0xe8] sm:$0xff] %vm217, %v419
      %457 = vst [vmem:[%s183 + $0xf0] sm:$0xff] %v423
      %458 = vst.msk [vmem:[%s183 + $0xf8] sm:$0xff] %vm217, %v425
      %s459 = smul.u32 16, %s18
      %p460 = scmp.lt.s32.totalorder %s17, 1
      %s461 = scalar_select %p460, %s17, 1
      %p462 = scmp.lt.s32.totalorder %s459, 31
      %s463 = scalar_select %p462, %s459, 31
      %s464 = smul.addr %s463, 2
      %s465 = smul.addr %s461, 64
      %s466 = sadd.s32 %s464, %s465
      %s467 = smul.addr %s466, 8
      %s468 = scalar_lea.vmem %s2, %s467
      // Predicated region
      $region29: #{tpu_custom_call.1} parent=27 // pred_check
        %p469 = pneg %p94
      $region30: #{tpu_custom_call.1} parent=27 // pred_check_branch
        %471 = sbr.rel (%p469) target = $region32
      $region31: #{tpu_custom_call.1} parent=27 // pred_region
        %s472 = smul.u32 16, %s18
      $region32: #{tpu_custom_call.1} parent=27 // pred_fallthru
        _
    $region28: #{tpu_custom_call.1} parent=5 // pred_fallthru
      _
    %p473 = scmp.le.s32.totalorder 2, %s8
    // Predicated region
    $region33: #{tpu_custom_call.1} parent=5 // pred_check
      %p474 = pneg %p473
    $region34: #{tpu_custom_call.1} parent=5 // pred_check_branch
      %476 = sbr.rel (%p474) target = $region36
    $region35: #{tpu_custom_call.1} parent=5 // pred_region
      %s477 = ssub.s32 %s8, 2
      // Predicated region
      $region37: #{tpu_custom_call.1} parent=35 // pred_check
        %p478 = pneg %p100
      $region38: #{tpu_custom_call.1} parent=35 // pred_check_branch
        %480 = sbr.rel (%p478) target = $region40
      $region39: #{tpu_custom_call.1} parent=35 // pred_region
        %s481 = smul.u32 16, %s20
        %p482 = scmp.lt.s32.totalorder %s19, 1
        %s483 = scalar_select %p482, %s19, 1
        %p484 = scmp.lt.s32.totalorder %s481, 31
        %s485 = scalar_select %p484, %s481, 31
        %s486 = smul.addr %s485, 2
        %s487 = smul.addr %s483, 64
        %s488 = sadd.s32 %s486, %s487
        %s489 = smul.addr %s488, 8
        %s490 = scalar_lea.vmem %s2, %s489
      $region40: #{tpu_custom_call.1} parent=35 // pred_fallthru
        _
    $region36: #{tpu_custom_call.1} parent=5 // pred_fallthru
      _
  $region6: #{tpu_custom_call.1} parent=0 // loop_footer
    %s12 = sadd.s32 1, %s8
  $region7: #{tpu_custom_call.1} parent=0 // loop_footer_branch
    %7 = sbr.rel target = $region3
  $region8: #{tpu_custom_call.1} parent=0 // loop_exit
    _

</llo_original>
